<compile_context>
chip_gen: v7x
topology: tpu7x:2x2x1
jax: 0.10.0
libtpu: 0.0.40
codegen_flags: <defaults>
</compile_context>

<pallas_src>
import jax
import jax.numpy as jnp
from jax.experimental import pallas as pl
from jax.experimental.pallas import tpu as pltpu


def _round_up(x, m):
    return ((x + m - 1) // m) * m


def simpleff_kernel(x_ref, w1_ref, b1_ref, w2_ref, b2_ref, w3_ref, b3_ref, o_ref):
    """Fused relu(relu(relu(x@W1+b1)@W2+b2)@W3+b3) on one batch tile."""
    x = x_ref[...]  # (TM, F) bf16
    h1 = jnp.maximum(
        jnp.dot(x, w1_ref[...], preferred_element_type=jnp.float32) + b1_ref[...], 0.0
    )
    h2 = jnp.maximum(
        jnp.dot(h1.astype(jnp.bfloat16), w2_ref[...],
                preferred_element_type=jnp.float32) + b2_ref[...], 0.0
    )
    h3 = jnp.maximum(
        jnp.dot(h2.astype(jnp.bfloat16), w3_ref[...],
                preferred_element_type=jnp.float32) + b3_ref[...], 0.0
    )
    o_ref[...] = h3.astype(o_ref.dtype)


def init_simpleff_params(key, num_features, num_labels):
    """Deterministic PyTorch-Linear-style init: U(-1/sqrt(fan_in), 1/sqrt(fan_in))."""
    dims = [(num_features, 200), (200, 100), (100, num_labels)]
    params = []
    for (fan_in, fan_out) in dims:
        key, kw, kb = jax.random.split(key, 3)
        bound = 1.0 / jnp.sqrt(float(fan_in))
        w = jax.random.uniform(kw, (fan_in, fan_out), jnp.float32, -bound, bound)
        b = jax.random.uniform(kb, (1, fan_out), jnp.float32, -bound, bound)
        params.extend([w, b])
    return tuple(params)


def _pick_tile(B):
    """Batch tile: multiple of 16 (bf16 sublane tile), >=2 grid steps when the
    batch is big enough to split (dual-TC on v7x), capped at 2048 rows."""
    TM_MAX = 2048
    if B <= 16:
        return 16
    if B < 2 * TM_MAX:
        half = -(-B // 2)  # ceil(B/2) -> grid of (at least) 2 steps
        return min(TM_MAX, _round_up(half, 16))
    return TM_MAX


def simpleff_forward(hero_features, params):
    # Glue: torch.cat(hero_features, 1); bf16 cast fused into the same pass.
    x = jnp.concatenate(hero_features, axis=1).astype(jnp.bfloat16)
    w1, b1, w2, b2, w3, b3 = params
    B, F = x.shape
    H1, H2, L = w1.shape[1], w2.shape[1], w3.shape[1]

    # MXU operands in bf16 (weights are tiny; cast is negligible).
    w1b = w1.astype(jnp.bfloat16)
    w2b = w2.astype(jnp.bfloat16)
    w3b = w3.astype(jnp.bfloat16)
    b1f = b1.astype(jnp.float32)
    b2f = b2.astype(jnp.float32)
    b3f = b3.astype(jnp.float32)

    TM = _pick_tile(B)
    grid = (pl.cdiv(B, TM),)

    # VMEM budget: ~2x the per-step working set (lane-padded), clamped to
    # [32 MiB, 48 MiB] — explicit above v5e's 16 MiB scoped default, with
    # headroom under v7x's 64 MiB physical VMEM.
    def _lanes(n):
        return _round_up(n, 128)

    bf16_b, f32_b = 2, 4
    act_bytes = TM * (_lanes(F) * bf16_b + _lanes(L) * f32_b)           # x + out blocks
    tmp_bytes = TM * (_lanes(H1) + _lanes(H2) + _lanes(L)) * (f32_b + bf16_b)
    wgt_bytes = (F * _lanes(H1) + H1 * _lanes(H2) + H2 * _lanes(L)) * bf16_b \
        + (_lanes(H1) + _lanes(H2) + _lanes(L)) * f32_b
    working_set = 2 * act_bytes + 2 * wgt_bytes + tmp_bytes
    vmem_bytes = int(min(max(2 * working_set, 32 * 1024 * 1024), 48 * 1024 * 1024))

    out = pl.pallas_call(
        simpleff_kernel,
        out_shape=jax.ShapeDtypeStruct((B, L), jnp.float32),
        grid=grid,
        in_specs=[
            pl.BlockSpec((TM, F), lambda i: (i, 0)),    # x: tiled over batch
            pl.BlockSpec((F, H1), lambda i: (0, 0)),    # W1: resident
            pl.BlockSpec((1, H1), lambda i: (0, 0)),    # b1: resident
            pl.BlockSpec((H1, H2), lambda i: (0, 0)),   # W2: resident
            pl.BlockSpec((1, H2), lambda i: (0, 0)),    # b2: resident
            pl.BlockSpec((H2, L), lambda i: (0, 0)),    # W3: resident
            pl.BlockSpec((1, L), lambda i: (0, 0)),     # b3: resident
        ],
        out_specs=pl.BlockSpec((TM, L), lambda i: (i, 0)),
        compiler_params=pltpu.CompilerParams(
            dimension_semantics=("parallel",),
            vmem_limit_bytes=vmem_bytes,
        ),
    )(x, w1b, b1f, w2b, b2f, w3b, b3f)

    return out  # true (batch, num_labels) shape — no slicing needed


def simpleff_reference(hero_features, params):
    x = jnp.concatenate(hero_features, axis=1).astype(jnp.float32)
    w1, b1, w2, b2, w3, b3 = params
    h = jnp.maximum(x @ w1 + b1, 0.0)
    h = jnp.maximum(h @ w2 + b2, 0.0)
    # NOTE: the PyTorch spec applies ReLU to the final Linear as well.
    return jnp.maximum(h @ w3 + b3, 0.0)


if __name__ == "__main__":
    key = jax.random.PRNGKey(0)
    k_in1, k_in2, k_params = jax.random.split(key, 3)

    batch = 8
    num_labels = 10
    # hero_features: list of per-hero feature tensors concatenated along dim 1.
    feat_a = jax.random.normal(k_in1, (batch, 16), jnp.float32)
    feat_b = jax.random.normal(k_in2, (batch, 16), jnp.float32)
    hero_features = [feat_a, feat_b]
    num_features = feat_a.shape[1] + feat_b.shape[1]  # 32

    params = init_simpleff_params(k_params, num_features, num_labels)

    out = simpleff_forward(hero_features, params)
    out = jax.block_until_ready(out)

    ref = simpleff_reference(hero_features, params)
    assert out.shape == (batch, num_labels)
    # Looser tolerance: kernel matmuls take bf16 operands (f32 accumulation).
    assert jnp.allclose(out, ref, rtol=5e-2, atol=5e-2), "mismatch vs JAX reference"

    print("KERNEL_OK")
</pallas_src>

<mosaic_0001>
module attributes {stable_mosaic.version = 11 : i64} {
  func.func @simpleff_kernel(%arg0: i32, %arg1: memref<16x32xbf16, #tpu.memory_space<vmem>>, %arg2: memref<32x200xbf16, #tpu.memory_space<vmem>>, %arg3: memref<1x200xf32, #tpu.memory_space<vmem>>, %arg4: memref<200x100xbf16, #tpu.memory_space<vmem>>, %arg5: memref<1x100xf32, #tpu.memory_space<vmem>>, %arg6: memref<100x10xbf16, #tpu.memory_space<vmem>>, %arg7: memref<1x10xf32, #tpu.memory_space<vmem>>, %arg8: memref<16x10xf32, #tpu.memory_space<vmem>>) attributes {dimension_semantics = [#tpu.dimension_semantics<parallel>], iteration_bounds = array<i64: 1>, scalar_prefetch = 0 : i64, scratch_operands = 0 : i64, tpu.core_type = #tpu.core_type<tc>, window_params = [{transform_indices = @transform_0, window_bounds = array<i64: 16, 32>}, {pipeline_mode = #tpu.pipeline_mode<synchronous>, transform_indices = @transform_1, window_bounds = array<i64: 32, 200>}, {pipeline_mode = #tpu.pipeline_mode<synchronous>, transform_indices = @transform_2, window_bounds = array<i64: 1, 200>}, {pipeline_mode = #tpu.pipeline_mode<synchronous>, transform_indices = @transform_3, window_bounds = array<i64: 200, 100>}, {pipeline_mode = #tpu.pipeline_mode<synchronous>, transform_indices = @transform_4, window_bounds = array<i64: 1, 100>}, {pipeline_mode = #tpu.pipeline_mode<synchronous>, transform_indices = @transform_5, window_bounds = array<i64: 100, 10>}, {pipeline_mode = #tpu.pipeline_mode<synchronous>, transform_indices = @transform_6, window_bounds = array<i64: 1, 10>}, {transform_indices = @transform_7, window_bounds = array<i64: 16, 10>}]} {
    %c0 = arith.constant 0 : index
    %c0_0 = arith.constant 0 : index
    %0 = vector.load %arg1[%c0, %c0_0] : memref<16x32xbf16, #tpu.memory_space<vmem>>, vector<16x32xbf16>
    %c0_1 = arith.constant 0 : index
    %c0_2 = arith.constant 0 : index
    %1 = vector.load %arg2[%c0_1, %c0_2] : memref<32x200xbf16, #tpu.memory_space<vmem>>, vector<32x200xbf16>
    %cst = arith.constant dense<0.000000e+00> : vector<16x200xf32>
    %2 = tpu.matmul %0, %1, %cst {dimension_numbers = #tpu.dot_dimension_numbers<[1], [0], [0], [1], [0, 0, 1, 1], [], []>} : vector<16x32xbf16>, vector<32x200xbf16>, vector<16x200xf32> -> vector<16x200xf32>
    %c0_3 = arith.constant 0 : index
    %c0_4 = arith.constant 0 : index
    %3 = vector.load %arg3[%c0_3, %c0_4] : memref<1x200xf32, #tpu.memory_space<vmem>>, vector<1x200xf32>
    %4 = vector.broadcast %3 : vector<1x200xf32> to vector<16x200xf32>
    %5 = arith.addf %2, %4 : vector<16x200xf32>
    %cst_5 = arith.constant 0.000000e+00 : f32
    %6 = vector.broadcast %cst_5 : f32 to vector<16x200xf32>
    %7 = arith.maximumf %5, %6 : vector<16x200xf32>
    %8 = arith.truncf %7 : vector<16x200xf32> to vector<16x200xbf16>
    %c0_6 = arith.constant 0 : index
    %c0_7 = arith.constant 0 : index
    %9 = vector.load %arg4[%c0_6, %c0_7] : memref<200x100xbf16, #tpu.memory_space<vmem>>, vector<200x100xbf16>
    %cst_8 = arith.constant dense<0.000000e+00> : vector<16x100xf32>
    %10 = tpu.matmul %8, %9, %cst_8 {dimension_numbers = #tpu.dot_dimension_numbers<[1], [0], [0], [1], [0, 0, 1, 1], [], []>} : vector<16x200xbf16>, vector<200x100xbf16>, vector<16x100xf32> -> vector<16x100xf32>
    %c0_9 = arith.constant 0 : index
    %c0_10 = arith.constant 0 : index
    %11 = vector.load %arg5[%c0_9, %c0_10] : memref<1x100xf32, #tpu.memory_space<vmem>>, vector<1x100xf32>
    %12 = vector.broadcast %11 : vector<1x100xf32> to vector<16x100xf32>
    %13 = arith.addf %10, %12 : vector<16x100xf32>
    %cst_11 = arith.constant 0.000000e+00 : f32
    %14 = vector.broadcast %cst_11 : f32 to vector<16x100xf32>
    %15 = arith.maximumf %13, %14 : vector<16x100xf32>
    %16 = arith.truncf %15 : vector<16x100xf32> to vector<16x100xbf16>
    %c0_12 = arith.constant 0 : index
    %c0_13 = arith.constant 0 : index
    %17 = vector.load %arg6[%c0_12, %c0_13] : memref<100x10xbf16, #tpu.memory_space<vmem>>, vector<100x10xbf16>
    %cst_14 = arith.constant dense<0.000000e+00> : vector<16x10xf32>
    %18 = tpu.matmul %16, %17, %cst_14 {dimension_numbers = #tpu.dot_dimension_numbers<[1], [0], [0], [1], [0, 0, 1, 1], [], []>} : vector<16x100xbf16>, vector<100x10xbf16>, vector<16x10xf32> -> vector<16x10xf32>
    %c0_15 = arith.constant 0 : index
    %c0_16 = arith.constant 0 : index
    %19 = vector.load %arg7[%c0_15, %c0_16] : memref<1x10xf32, #tpu.memory_space<vmem>>, vector<1x10xf32>
    %20 = vector.broadcast %19 : vector<1x10xf32> to vector<16x10xf32>
    %21 = arith.addf %18, %20 : vector<16x10xf32>
    %cst_17 = arith.constant 0.000000e+00 : f32
    %22 = vector.broadcast %cst_17 : f32 to vector<16x10xf32>
    %23 = arith.maximumf %21, %22 : vector<16x10xf32>
    %c0_18 = arith.constant 0 : index
    %c0_19 = arith.constant 0 : index
    %24 = vector.load %arg8[%c0_18, %c0_19] : memref<16x10xf32, #tpu.memory_space<vmem>>, vector<16x10xf32>
    tpu.vector_store %arg8[%c0_18, %c0_19], %23 {strides = array<i32>} : memref<16x10xf32, #tpu.memory_space<vmem>>, vector<16x10xf32>,
    return
  }
  func.func @transform_0(%arg0: i32) -> (i32, i32) {
    %c0_i32 = arith.constant 0 : i32
    %c0_i32_0 = arith.constant 0 : i32
    return %arg0, %c0_i32 : i32, i32
  }
  func.func @transform_1(%arg0: i32) -> (i32, i32) {
    %c0_i32 = arith.constant 0 : i32
    %c0_i32_0 = arith.constant 0 : i32
    %c0_i32_1 = arith.constant 0 : i32
    return %c0_i32, %c0_i32_0 : i32, i32
  }
  func.func @transform_2(%arg0: i32) -> (i32, i32) {
    %c0_i32 = arith.constant 0 : i32
    %c0_i32_0 = arith.constant 0 : i32
    %c0_i32_1 = arith.constant 0 : i32
    return %c0_i32, %c0_i32_0 : i32, i32
  }
  func.func @transform_3(%arg0: i32) -> (i32, i32) {
    %c0_i32 = arith.constant 0 : i32
    %c0_i32_0 = arith.constant 0 : i32
    %c0_i32_1 = arith.constant 0 : i32
    return %c0_i32, %c0_i32_0 : i32, i32
  }
  func.func @transform_4(%arg0: i32) -> (i32, i32) {
    %c0_i32 = arith.constant 0 : i32
    %c0_i32_0 = arith.constant 0 : i32
    %c0_i32_1 = arith.constant 0 : i32
    return %c0_i32, %c0_i32_0 : i32, i32
  }
  func.func @transform_5(%arg0: i32) -> (i32, i32) {
    %c0_i32 = arith.constant 0 : i32
    %c0_i32_0 = arith.constant 0 : i32
    %c0_i32_1 = arith.constant 0 : i32
    return %c0_i32, %c0_i32_0 : i32, i32
  }
  func.func @transform_6(%arg0: i32) -> (i32, i32) {
    %c0_i32 = arith.constant 0 : i32
    %c0_i32_0 = arith.constant 0 : i32
    %c0_i32_1 = arith.constant 0 : i32
    return %c0_i32, %c0_i32_0 : i32, i32
  }
  func.func @transform_7(%arg0: i32) -> (i32, i32) {
    %c0_i32 = arith.constant 0 : i32
    %c0_i32_0 = arith.constant 0 : i32
    return %arg0, %c0_i32 : i32, i32
  }
}

</mosaic_0001>

<llo_original>
// kernel: tpu_custom_call.1
$region0: #{tpu_custom_call.1}
  #allocation0 [shape = 'u32[]', space=smem, size = 0x4, offset = 0x4, fixed_abs, tag = 'smem constant byte address 0x4 - core index']
  #allocation1 [shape = 'u32[144,128]{1,0:T(1,128)}', space=vmem, size = 0x12000, scoped, tag = 'internal scratch']
  %s0 = inlined_call_operand.vmem [shape: bf16[8,32], index: 0, kind: input, shape index: {}]
  %s1 = inlined_call_operand.vmem [shape: bf16[32,200], index: 1, kind: input, shape index: {}]
  %s2 = inlined_call_operand.vmem [shape: f32[1,200], index: 2, kind: input, shape index: {}]
  %s3 = inlined_call_operand.hbm [shape: bf16[200,100], index: 3, kind: input, shape index: {}]
  %s4 = inlined_call_operand.vmem [shape: f32[1,100], index: 4, kind: input, shape index: {}]
  %s5 = inlined_call_operand.vmem [shape: bf16[100,10], index: 5, kind: input, shape index: {}]
  %s6 = inlined_call_operand.vmem [shape: f32[1,10], index: 6, kind: input, shape index: {}]
  %s7 = inlined_call_operand.hbm [shape: f32[8,10], index: 7, kind: output, shape index: {}]
  %s8 = sld [smem:[#allocation0]]
  $region42: #{tpu_custom_call.1} parent=0
    _
  %s10 = ssub.s32 1, %s8
  %s11 = scalar_select 0, %s10, %s8
  $region1: #{tpu_custom_call.1} parent=0
    #allocation2 [shape = 'u8[51200]{0}', space=vmem, size = 0xc800, scoped, tag = 'input window, operand 3, single buffered']
    #allocation3 [shape = 's32[1]{0}', space=sflag, size = 0x4, scoped, tag = 'scoped memory for tpu_custom_call.1']
    #allocation4 [shape = 's32[1]{0}', space=sflag, size = 0x4, scoped, tag = 'scoped memory for tpu_custom_call.1']
    #allocation5 [shape = 'u8[8192]{0}', space=vmem, size = 0x2000, scoped, tag = 'output window, operand 0, single buffered']
    %12 = vsyncpa [#allocation3], 0
    %13 = vsyncpa [#allocation4], 0
    // Predicated region
    $region2: #{tpu_custom_call.1} parent=1 // pred_check
      _
    $region3: #{tpu_custom_call.1} parent=1 // pred_check_branch
      %15 = sbr.rel (0) target = $region5
    $region4: #{tpu_custom_call.1} parent=1 // pred_region
      _
    $region5: #{tpu_custom_call.1} parent=1 // pred_fallthru
      _
    // Predicated region
    $region6: #{tpu_custom_call.1} parent=1 // pred_check
      _
    $region7: #{tpu_custom_call.1} parent=1 // pred_check_branch
      %17 = sbr.rel (0) target = $region9
    $region8: #{tpu_custom_call.1} parent=1 // pred_region
      _
    $region9: #{tpu_custom_call.1} parent=1 // pred_fallthru
      _
    // Predicated region
    $region10: #{tpu_custom_call.1} parent=1 // pred_check
      _
    $region11: #{tpu_custom_call.1} parent=1 // pred_check_branch
      %19 = sbr.rel (0) target = $region13
    $region12: #{tpu_custom_call.1} parent=1 // pred_region
      _
    $region13: #{tpu_custom_call.1} parent=1 // pred_fallthru
      _
    // Predicated region
    $region14: #{tpu_custom_call.1} parent=1 // pred_check
      _
    $region15: #{tpu_custom_call.1} parent=1 // pred_check_branch
      %21 = sbr.rel (0) target = $region17
    $region16: #{tpu_custom_call.1} parent=1 // pred_region
      %s23 = ssub.s32 1600, 1600
      %24 = vsyncadd [#allocation3], %s23
      %s25 = sshll.u32 [#allocation2], 4
      %s26 = int_to_ptr.vmem [resolvable:$true] %s25
      %31 = dma.hbm_to_vmem [thread:$0]  %s3, 1600, %s26, [#allocation3], 64, 64, 4
    $region17: #{tpu_custom_call.1} parent=1 // pred_fallthru
      _
    // Predicated region
    $region18: #{tpu_custom_call.1} parent=1 // pred_check
      _
    $region19: #{tpu_custom_call.1} parent=1 // pred_check_branch
      %33 = sbr.rel (0) target = $region21
    $region20: #{tpu_custom_call.1} parent=1 // pred_region
      _
    $region21: #{tpu_custom_call.1} parent=1 // pred_fallthru
      _
    // Predicated region
    $region22: #{tpu_custom_call.1} parent=1 // pred_check
      _
    $region23: #{tpu_custom_call.1} parent=1 // pred_check_branch
      %35 = sbr.rel (0) target = $region25
    $region24: #{tpu_custom_call.1} parent=1 // pred_region
      _
    $region25: #{tpu_custom_call.1} parent=1 // pred_fallthru
      _
    // Predicated region
    $region26: #{tpu_custom_call.1} parent=1 // pred_check
      _
    $region27: #{tpu_custom_call.1} parent=1 // pred_check_branch
      %37 = sbr.rel (0) target = $region29
    $region28: #{tpu_custom_call.1} parent=1 // pred_region
      _
    $region29: #{tpu_custom_call.1} parent=1 // pred_fallthru
      _
    // Predicated region
    $region30: #{tpu_custom_call.1} parent=1 // pred_check
      _
    $region31: #{tpu_custom_call.1} parent=1 // pred_check_branch
      %39 = sbr.rel (0) target = $region33
    $region32: #{tpu_custom_call.1} parent=1 // pred_region
      %40 = dma.done [#allocation3], 1600
    $region33: #{tpu_custom_call.1} parent=1 // pred_fallthru
      _
    %v42 = vld [vmem:[%s0] sm:$0xf]
    %v43 = vld [vmem:[%s0 + $0x4] sm:$0xf]
    %v44 = vld [vmem:[%s1] sm:$0xff]
    %v45 = vld [vmem:[%s1 + $0x8] sm:$0xff]
    %v46 = vld [vmem:[%s1 + $0x10] sm:$0xff]
    %v47 = vld [vmem:[%s1 + $0x18] sm:$0xff]
    %v48 = vld [vmem:[%s2] sm:$0x3]
    %v50 = vlaneseq
    %v51 = vshrl.u32 %v50, 7
    %v52 = vsub.s32 0, %v51
    %v53 = vrot.slane %v48, %v52
    %v54 = vlaneseq
    %v55 = vshrl.u32 %v54, 7
    %v56 = vsub.s32 1, %v55
    %v57 = vrot.slane %v48, %v56
    %v62 = vunpack.c.l.b16 %v42
    %v63 = vunpack.c.l.b16 %v43
    %v64 = vpack.c.b16 %v63, %v62
    %v69 = vunpack.c.l.b16 %v44
    %v70 = vunpack.c.h.b16 %v44
    %v71 = vunpack.c.l.b16 %v45
    %v72 = vunpack.c.h.b16 %v45
    %v73 = vunpack.c.l.b16 %v46
    %v74 = vunpack.c.h.b16 %v46
    %v75 = vunpack.c.l.b16 %v47
    %v76 = vunpack.c.h.b16 %v47
    %v77 = vpack.c.b16 %v71, %v69
    %v78 = vpack.c.b16 %v72, %v70
    %v79 = vpack.c.b16 %v75, %v73
    %v80 = vpack.c.b16 %v76, %v74
    %vm85 = vcmask 261120
    %v87 = vsel %vm85, %v64, 0
    %89 = vmatprep.subr.bf16.mxu0 %v78
    %90 = vmatpush1.bf16.msra.mxu0 %v77
    %91 = vmatprep.subr.bf16.mxu0 %v80
    %92 = vmatpush1.bf16.msra.mxu0 %v79
    %93 = vmatprep.subr.bf16.mxu0 0
    %94 = vmatpush1.bf16.msra.mxu0 0
    %95 = vmatprep.subr.bf16.mxu0 0
    %96 = vmatpush1.bf16.msra.mxu0 0
    %97 = vmatprep.subr.bf16.mxu0 0
    %98 = vmatpush1.bf16.msra.mxu0 0
    %99 = vmatprep.subr.bf16.mxu0 0
    %100 = vmatpush1.bf16.msra.mxu0 0
    %101 = vmatprep.subr.bf16.mxu0 0
    %102 = vmatpush1.bf16.msra.mxu0 0
    %103 = vmatprep.subr.bf16.mxu0 0
    %104 = vmatpush1.bf16.msra.mxu0 0
    %105 = vmatprep.subr.bf16.mxu0 0
    %106 = vmatpush1.bf16.msra.mxu0 0
    %107 = vmatprep.subr.bf16.mxu0 0
    %108 = vmatpush1.bf16.msra.mxu0 0
    %109 = vmatprep.subr.bf16.mxu0 0
    %110 = vmatpush1.bf16.msra.mxu0 0
    %111 = vmatprep.subr.bf16.mxu0 0
    %112 = vmatpush1.bf16.msra.mxu0 0
    %113 = vmatprep.subr.bf16.mxu0 0
    %114 = vmatpush1.bf16.msra.mxu0 0
    %115 = vmatprep.subr.bf16.mxu0 0
    %116 = vmatpush1.bf16.msra.mxu0 0
    %117 = vmatprep.subr.bf16.mxu0 0
    %118 = vmatpush1.bf16.msra.mxu0 0
    %119 = vmatprep.subr.bf16.mxu0 0
    %120 = vmatpush1.bf16.msra.mxu0 0
    %121 = vmatprep.mubr.bf16.mxu0 0
    %122 = vmatmul.mubr.bf16.gmra.mrb[0].mxu0 %v87
    %v123 = vpop.f32.mrb[0].mxu0
    %v124 = vadd.f32 %v53, %v123
    %v125 = vpop.f32.mrb[0].mxu0
    %v126 = vadd.f32 %v57, %v125
    %v127 = vpop.f32.mrb[0].mxu0
    %v128 = vadd.f32 %v53, %v127
    %v129 = vpop.f32.mrb[0].mxu0
    %v130 = vadd.f32 %v57, %v129
    %131 = vdwg.mxu0
    %v132 = vmax.f32 %v124, 0.0
    %v133 = vmax.f32 %v126, 0.0
    %v134 = vmax.f32 %v128, 0.0
    %v135 = vmax.f32 %v130, 0.0
    %v136 = vpack.c.bf16 %v134, %v132
    %v137 = vpack.c.bf16 %v135, %v133
    %v138 = vld [vmem:[#allocation2] sm:$0xf]
    %v139 = vld [vmem:[#allocation2 + $0x4] sm:$0xf]
    %v140 = vld [vmem:[#allocation2 + $0x8] sm:$0xf]
    %v141 = vld [vmem:[#allocation2 + $0xc] sm:$0xf]
    %v142 = vld [vmem:[#allocation2 + $0x10] sm:$0xf]
    %v143 = vld [vmem:[#allocation2 + $0x14] sm:$0xf]
    %v144 = vld [vmem:[#allocation2 + $0x18] sm:$0xf]
    %v145 = vld [vmem:[#allocation2 + $0x1c] sm:$0xf]
    %v146 = vld [vmem:[#allocation2 + $0x20] sm:$0xf]
    %v147 = vld [vmem:[#allocation2 + $0x24] sm:$0xf]
    %v148 = vld [vmem:[#allocation2 + $0x28] sm:$0xf]
    %v149 = vld [vmem:[#allocation2 + $0x2c] sm:$0xf]
    %v150 = vld [vmem:[#allocation2 + $0x30] sm:$0xf]
    %v151 = vld [vmem:[#allocation2 + $0x34] sm:$0xf]
    %v152 = vld [vmem:[#allocation2 + $0x38] sm:$0xf]
    %v153 = vld [vmem:[#allocation2 + $0x3c] sm:$0xf]
    %v154 = vld [vmem:[#allocation2 + $0x40] sm:$0xf]
    %v155 = vld [vmem:[#allocation2 + $0x44] sm:$0xf]
    %v156 = vld [vmem:[#allocation2 + $0x48] sm:$0xf]
    %v157 = vld [vmem:[#allocation2 + $0x4c] sm:$0xf]
    %v158 = vld [vmem:[#allocation2 + $0x50] sm:$0xf]
    %v159 = vld [vmem:[#allocation2 + $0x54] sm:$0xf]
    %v160 = vld [vmem:[#allocation2 + $0x58] sm:$0xf]
    %v161 = vld [vmem:[#allocation2 + $0x5c] sm:$0xf]
    %v162 = vld [vmem:[#allocation2 + $0x60] sm:$0xf]
    %v163 = vld [vmem:[%s4] sm:$0x1]
    %v165 = vlaneseq
    %v166 = vshrl.u32 %v165, 7
    %v167 = vsub.s32 0, %v166
    %v168 = vrot.slane %v163, %v167
    %v195 = vunpack.c.l.b16 %v138
    %v196 = vunpack.c.l.b16 %v139
    %v197 = vunpack.c.l.b16 %v140
    %v198 = vunpack.c.l.b16 %v141
    %v199 = vunpack.c.l.b16 %v142
    %v200 = vunpack.c.l.b16 %v143
    %v201 = vunpack.c.l.b16 %v144
    %v202 = vunpack.c.l.b16 %v145
    %v203 = vunpack.c.l.b16 %v146
    %v204 = vunpack.c.l.b16 %v147
    %v205 = vunpack.c.l.b16 %v148
    %v206 = vunpack.c.l.b16 %v149
    %v207 = vunpack.c.l.b16 %v150
    %v208 = vunpack.c.l.b16 %v151
    %v209 = vunpack.c.l.b16 %v152
    %v210 = vunpack.c.l.b16 %v153
    %v211 = vunpack.c.l.b16 %v154
    %v212 = vunpack.c.l.b16 %v155
    %v213 = vunpack.c.l.b16 %v156
    %v214 = vunpack.c.l.b16 %v157
    %v215 = vunpack.c.l.b16 %v158
    %v216 = vunpack.c.l.b16 %v159
    %v217 = vunpack.c.l.b16 %v160
    %v218 = vunpack.c.l.b16 %v161
    %v219 = vunpack.c.l.b16 %v162
    %v220 = vpack.c.b16 %v196, %v195
    %v221 = vpack.c.b16 %v198, %v197
    %v222 = vpack.c.b16 %v200, %v199
    %v223 = vpack.c.b16 %v202, %v201
    %v224 = vpack.c.b16 %v204, %v203
    %v225 = vpack.c.b16 %v206, %v205
    %v226 = vpack.c.b16 %v208, %v207
    %v227 = vpack.c.b16 %v210, %v209
    %v228 = vpack.c.b16 %v212, %v211
    %v229 = vpack.c.b16 %v214, %v213
    %v230 = vpack.c.b16 %v216, %v215
    %v231 = vpack.c.b16 %v218, %v217
    %v232 = vpack.c.b16 %v219, %v219
    %vm245 = vcmask 588800
    %v247 = vsel %vm245, %v137, 0
    %vm249 = vcmask 1043456
    %v251 = vsel %vm249, %v232, 0
    %253 = vmatprep.subr.bf16.mxu0 0
    %254 = vmatpush1.bf16.msra.mxu0 %v220
    %255 = vmatprep.subr.bf16.mxu0 0
    %256 = vmatpush1.bf16.msra.mxu0 %v221
    %257 = vmatprep.subr.bf16.mxu0 0
    %258 = vmatpush1.bf16.msra.mxu0 %v222
    %259 = vmatprep.subr.bf16.mxu0 0
    %260 = vmatpush1.bf16.msra.mxu0 %v223
    %261 = vmatprep.subr.bf16.mxu0 0
    %262 = vmatpush1.bf16.msra.mxu0 %v224
    %263 = vmatprep.subr.bf16.mxu0 0
    %264 = vmatpush1.bf16.msra.mxu0 %v225
    %265 = vmatprep.subr.bf16.mxu0 0
    %266 = vmatpush1.bf16.msra.mxu0 %v226
    %267 = vmatprep.subr.bf16.mxu0 0
    %268 = vmatpush1.bf16.msra.mxu0 %v227
    %269 = vmatprep.subr.bf16.mxu0 0
    %270 = vmatpush1.bf16.msra.mxu0 %v228
    %271 = vmatprep.subr.bf16.mxu0 0
    %272 = vmatpush1.bf16.msra.mxu0 %v229
    %273 = vmatprep.subr.bf16.mxu0 0
    %274 = vmatpush1.bf16.msra.mxu0 %v230
    %275 = vmatprep.subr.bf16.mxu0 0
    %276 = vmatpush1.bf16.msra.mxu0 %v231
    %277 = vmatprep.subr.bf16.mxu0 0
    %278 = vmatpush1.bf16.msra.mxu0 %v251
    %279 = vmatprep.subr.bf16.mxu0 0
    %280 = vmatpush1.bf16.msra.mxu0 0
    %281 = vmatprep.subr.bf16.mxu0 0
    %282 = vmatpush1.bf16.msra.mxu0 0
    %283 = vmatprep.subr.bf16.mxu0 0
    %284 = vmatpush1.bf16.msra.mxu0 0
    %285 = vmatprep.mubr.bf16.mxu0 %v247
    %286 = vmatmul.mubr.bf16.gmra.mrb[0].mxu0 %v136
    %v287 = vpop.f32.mrb[0].mxu0
    %v288 = vadd.f32 %v168, %v287
    %v289 = vpop.f32.mrb[0].mxu0
    %v290 = vpop.f32.mrb[0].mxu0
    %v291 = vadd.f32 %v168, %v290
    %v292 = vpop.f32.mrb[0].mxu0
    %293 = vdwg.mxu0
    %v294 = vmax.f32 %v288, 0.0
    %v295 = vmax.f32 %v291, 0.0
    %v296 = vpack.c.bf16 %v295, %v294
    %v297 = vld [vmem:[%s5] sm:$0xf]
    %v298 = vld [vmem:[%s5 + $0x4] sm:$0xf]
    %v299 = vld [vmem:[%s5 + $0x8] sm:$0xf]
    %v300 = vld [vmem:[%s5 + $0xc] sm:$0xf]
    %v301 = vld [vmem:[%s5 + $0x10] sm:$0xf]
    %v302 = vld [vmem:[%s5 + $0x14] sm:$0xf]
    %v303 = vld [vmem:[%s5 + $0x18] sm:$0xf]
    %v304 = vld [vmem:[%s5 + $0x1c] sm:$0xf]
    %v305 = vld [vmem:[%s5 + $0x20] sm:$0xf]
    %v306 = vld [vmem:[%s5 + $0x24] sm:$0xf]
    %v307 = vld [vmem:[%s5 + $0x28] sm:$0xf]
    %v308 = vld [vmem:[%s5 + $0x2c] sm:$0xf]
    %v309 = vld [vmem:[%s5 + $0x30] sm:$0x3]
    %v310 = vld [vmem:[%s6] sm:$0x1]
    %v312 = vlaneseq
    %v313 = vshrl.u32 %v312, 7
    %v314 = vsub.s32 0, %v313
    %v315 = vrot.slane %v310, %v314
    %v330 = vunpack.c.l.b16 %v297
    %v331 = vunpack.c.l.b16 %v298
    %v332 = vunpack.c.l.b16 %v299
    %v333 = vunpack.c.l.b16 %v300
    %v334 = vunpack.c.l.b16 %v301
    %v335 = vunpack.c.l.b16 %v302
    %v336 = vunpack.c.l.b16 %v303
    %v337 = vunpack.c.l.b16 %v304
    %v338 = vunpack.c.l.b16 %v305
    %v339 = vunpack.c.l.b16 %v306
    %v340 = vunpack.c.l.b16 %v307
    %v341 = vunpack.c.l.b16 %v308
    %v342 = vunpack.c.l.b16 %v309
    %v343 = vpack.c.b16 %v331, %v330
    %v344 = vpack.c.b16 %v333, %v332
    %v345 = vpack.c.b16 %v335, %v334
    %v346 = vpack.c.b16 %v337, %v336
    %v347 = vpack.c.b16 %v339, %v338
    %v348 = vpack.c.b16 %v341, %v340
    %v349 = vpack.c.b16 %v342, %v342
    %vm356 = vcmask 818176
    %v358 = vsel %vm356, %v296, 0
    %vm360 = vcmask 1041408
    %v362 = vsel %vm360, %v349, 0
    %364 = vmatprep.subr.bf16.mxu0 0
    %365 = vmatpush1.bf16.msra.mxu0 %v343
    %366 = vmatprep.subr.bf16.mxu0 0
    %367 = vmatpush1.bf16.msra.mxu0 %v344
    %368 = vmatprep.subr.bf16.mxu0 0
    %369 = vmatpush1.bf16.msra.mxu0 %v345
    %370 = vmatprep.subr.bf16.mxu0 0
    %371 = vmatpush1.bf16.msra.mxu0 %v346
    %372 = vmatprep.subr.bf16.mxu0 0
    %373 = vmatpush1.bf16.msra.mxu0 %v347
    %374 = vmatprep.subr.bf16.mxu0 0
    %375 = vmatpush1.bf16.msra.mxu0 %v348
    %376 = vmatprep.subr.bf16.mxu0 0
    %377 = vmatpush1.bf16.msra.mxu0 %v362
    %378 = vmatprep.subr.bf16.mxu0 0
    %379 = vmatpush1.bf16.msra.mxu0 0
    %380 = vmatprep.subr.bf16.mxu0 0
    %381 = vmatpush1.bf16.msra.mxu0 0
    %382 = vmatprep.subr.bf16.mxu0 0
    %383 = vmatpush1.bf16.msra.mxu0 0
    %384 = vmatprep.subr.bf16.mxu0 0
    %385 = vmatpush1.bf16.msra.mxu0 0
    %386 = vmatprep.subr.bf16.mxu0 0
    %387 = vmatpush1.bf16.msra.mxu0 0
    %388 = vmatprep.subr.bf16.mxu0 0
    %389 = vmatpush1.bf16.msra.mxu0 0
    %390 = vmatprep.subr.bf16.mxu0 0
    %391 = vmatpush1.bf16.msra.mxu0 0
    %392 = vmatprep.subr.bf16.mxu0 0
    %393 = vmatpush1.bf16.msra.mxu0 0
    %394 = vmatprep.subr.bf16.mxu0 0
    %395 = vmatpush1.bf16.msra.mxu0 0
    %396 = vmatprep.mubr.bf16.mxu0 0
    %397 = vmatmul.mubr.bf16.gmra.mrb[0].mxu0 %v358
    %v398 = vpop.f32.mrb[0].mxu0
    %v399 = vadd.f32 %v315, %v398
    %v400 = vpop.f32.mrb[0].mxu0
    %v401 = vpop.f32.mrb[0].mxu0
    %v402 = vadd.f32 %v315, %v401
    %v403 = vpop.f32.mrb[0].mxu0
    %404 = vdwg.mxu0
    %v405 = vmax.f32 %v399, 0.0
    %v406 = vmax.f32 %v402, 0.0
    %vm407 = vcmask 80896
    %408 = vst.msk [vmem:[#allocation5] sm:$0xff] %vm407, %v405
    %409 = vst.msk [vmem:[#allocation5 + $0x8] sm:$0xff] %vm407, %v406
    // Predicated region
    $region34: #{tpu_custom_call.1} parent=1 // pred_check
      _
    $region35: #{tpu_custom_call.1} parent=1 // pred_check_branch
      %411 = sbr.rel (0) target = $region37
    $region36: #{tpu_custom_call.1} parent=1 // pred_region
      %s413 = ssub.s32 256, 128
      %414 = vsyncadd [#allocation4], %s413
      %s415 = sshll.u32 [#allocation5], 4
      %s416 = int_to_ptr.vmem [resolvable:$true] %s415
      %421 = dma.vmem_to_hbm [thread:$0]  %s416, 128, %s7, [#allocation4], 128, 128, 8
    $region37: #{tpu_custom_call.1} parent=1 // pred_fallthru
      _
    // Predicated region
    $region38: #{tpu_custom_call.1} parent=1 // pred_check
      _
    $region39: #{tpu_custom_call.1} parent=1 // pred_check_branch
      %423 = sbr.rel (0) target = $region41
    $region40: #{tpu_custom_call.1} parent=1 // pred_region
      %424 = dma.done [#allocation4], 256
    $region41: #{tpu_custom_call.1} parent=1 // pred_fallthru
      _
    %425 = vsyncpa [#allocation3], 1
    %426 = vsyncpa [#allocation4], 1

</llo_original>
